<compile_context>
chip_gen: v7x
topology: tpu7x:2x2x1
jax: 0.10.0
libtpu: 0.0.40
codegen_flags: <defaults>
</compile_context>

<pallas_src>
import functools

import jax
import jax.numpy as jnp
from jax.experimental import pallas as pl
from jax.experimental.pallas import tpu as pltpu

LN_EPS = 1e-5  # PyTorch nn.LayerNorm default


def _round_up(x, m):
    return (x + m - 1) // m * m


# ---------------------------------------------------------------------------
# Kernel
# ---------------------------------------------------------------------------
def _ln_matmul_kernel(x_ref, w_ref, b_ref, o_ref):
    """LayerNorm (affine folded into W/b) over last dim + matmul + bias."""
    x = x_ref[...].astype(jnp.float32)                       # (tm, D)
    mean = jnp.mean(x, axis=-1, keepdims=True)
    xc = x - mean
    var = jnp.mean(xc * xc, axis=-1, keepdims=True)          # biased, like torch
    xn = xc * jax.lax.rsqrt(var + LN_EPS)                    # rsqrt -> EUP slot
    # Matmul in the weight dtype (bf16 weights -> full-rate MXU), f32 accum.
    y = xn.astype(w_ref.dtype)
    acc = jnp.dot(y, w_ref[...], preferred_element_type=jnp.float32)
    acc = acc + b_ref[...].astype(jnp.float32)                # (1, tn) broadcast
    o_ref[...] = acc.astype(o_ref.dtype)


# ---------------------------------------------------------------------------
# Tile / VMEM planning
# ---------------------------------------------------------------------------
@functools.lru_cache(maxsize=None)
def _vmem_budget_bytes():
    """(tile budget, requested vmem_limit cap) derived per TPU generation."""
    cap = None
    try:
        cap = getattr(pltpu.get_tpu_info(), "vmem_capacity_bytes", None)
    except Exception:
        cap = None
    if cap is None or cap <= 64 * 1024 * 1024:
        # v7x-class parts: 64 MiB VMEM per TensorCore; leave headroom for
        # compiler-internal scratch.
        return 40 * 1024 * 1024, 48 * 1024 * 1024
    # v5e / v6e: 128 MiB — spend it so the full weight stays VMEM-resident.
    return 88 * 1024 * 1024, 100 * 1024 * 1024


def _vmem_est(tm, tn, D, x_bytes, w_bytes, o_bytes):
    """Double-buffered pipelined tiles + kernel-body f32 temporaries."""
    return (2 * tm * D * x_bytes          # x tiles
            + 2 * tm * tn * o_bytes       # output tiles
            + 2 * D * tn * w_bytes        # weight tiles
            + 2 * tn * 4                  # bias tiles
            + 2 * tm * D * 4              # f32 x / xn LN temporaries
            + tm * tn * 4)                # f32 matmul accumulator


def _choose_tiles(R, D, N_pad, x_bytes, w_bytes, o_bytes, budget, tm_max=512):
    def est(tm_, tn_):
        return _vmem_est(tm_, tn_, D, x_bytes, w_bytes, o_bytes)

    tm = min(tm_max, _round_up(R, 8))
    tn = N_pad
    # 1) Shrink tm first (down to 256) so grid_n stays 1: the weight is then
    #    fetched from HBM exactly once and LN is computed once per row.
    while est(tm, tn) > budget and tm > 256:
        tm = max(256, _round_up(tm // 2, 8))
    # 2) Only then tile N.  Keep tn a multiple of 256 when N_pad allows
    #    (v6e/v7x 256-wide MXUs); otherwise multiples of 128 (fine on v5e).
    step = 256 if N_pad % 256 == 0 else 128
    while est(tm, tn) > budget and tn > step:
        cand = tn - step
        while cand > step and N_pad % cand != 0:
            cand -= step
        tn = cand
    # 3) Last resort: keep shrinking tm.
    while est(tm, tn) > budget and tm > 8:
        tm = max(8, (tm // 2) // 8 * 8)
    return tm, tn


# ---------------------------------------------------------------------------
# Fused LN + matmul wrapper
# ---------------------------------------------------------------------------
def fused_ln_matmul(x2d, w_pad, b_pad, n_out=None):
    """LayerNorm(x2d, no affine) @ w_pad + b_pad.

    x2d:   (R, D)
    w_pad: (D, N_pad), N_pad % 128 == 0, LN gamma pre-folded in (bf16).
    b_pad: (1, N_pad) float32, LN beta pre-folded in.
    Returns (R, n_out).
    """
    R, D = x2d.shape
    Dw, N_pad = w_pad.shape
    assert Dw == D and N_pad % 128 == 0
    if n_out is None:
        n_out = N_pad

    x_bytes = jnp.dtype(x2d.dtype).itemsize
    w_bytes = jnp.dtype(w_pad.dtype).itemsize
    o_bytes = x_bytes

    budget, limit_cap = _vmem_budget_bytes()
    tm, tn = _choose_tiles(R, D, N_pad, x_bytes, w_bytes, o_bytes, budget)

    grid_m = pl.cdiv(R, tm)     # partial tail block is masked by Pallas
    grid_n = N_pad // tn

    if grid_n == 1:
        # Weight / bias block index constant across the grid: fetched once.
        grid = (grid_m,)
        in_specs = [
            pl.BlockSpec((tm, D), lambda i: (i, 0)),
            pl.BlockSpec((D, tn), lambda i: (0, 0)),
            pl.BlockSpec((1, tn), lambda i: (0, 0)),
        ]
        out_specs = pl.BlockSpec((tm, tn), lambda i: (i, 0))
        dim_sem = ("parallel",)
    else:
        # N is the OUTER grid axis: each (D, tn) weight tile is fetched only
        # once (grid_n weight fetches total instead of grid_m * grid_n); the
        # much smaller x tiles re-stream on the inner row axis.
        grid = (grid_n, grid_m)
        in_specs = [
            pl.BlockSpec((tm, D), lambda j, i: (i, 0)),
            pl.BlockSpec((D, tn), lambda j, i: (0, j)),
            pl.BlockSpec((1, tn), lambda j, i: (0, j)),
        ]
        out_specs = pl.BlockSpec((tm, tn), lambda j, i: (i, j))
        dim_sem = ("parallel", "parallel")

    cost = pl.CostEstimate(
        flops=2 * grid_m * tm * D * N_pad,
        transcendentals=grid_n * grid_m * tm,           # rsqrt per row / N tile
        bytes_accessed=(grid_n * R * D * x_bytes        # x re-read per N tile
                        + D * N_pad * w_bytes           # weight read exactly once
                        + R * N_pad * o_bytes           # output written once
                        + grid_n * N_pad * 4),          # bias
    )
    vmem_limit = int(min(limit_cap,
                         max(_vmem_est(tm, tn, D, x_bytes, w_bytes, o_bytes)
                             + (4 << 20), 32 << 20)))

    out = pl.pallas_call(
        _ln_matmul_kernel,
        out_shape=jax.ShapeDtypeStruct((R, N_pad), x2d.dtype),
        grid_spec=pltpu.PrefetchScalarGridSpec(
            num_scalar_prefetch=0,
            grid=grid,
            in_specs=in_specs,
            out_specs=out_specs,
        ),
        compiler_params=pltpu.CompilerParams(
            dimension_semantics=dim_sem,
            vmem_limit_bytes=vmem_limit),
        cost_estimate=cost,
    )(x2d, w_pad, b_pad)

    return out if n_out == N_pad else out[:, :n_out]


# ---------------------------------------------------------------------------
# Parameters
# ---------------------------------------------------------------------------
def init_normqkv_params(key, dim, dtype=jnp.float32, random_affine=True):
    """Synthetic parameters mirroring Normqkv.__init__ shapes."""
    keys = jax.random.split(key, 16)

    def linear(kw, kb):
        # PyTorch Linear weight is (out, in); store transposed (in, out).
        w = jax.random.normal(kw, (dim, dim), dtype) * 0.02
        b = jax.random.normal(kb, (dim,), dtype) * 0.02
        return w.T, b

    def norm(kg, kb):
        if random_affine:
            g = 1.0 + 0.1 * jax.random.normal(kg, (dim,), dtype)
            b = 0.1 * jax.random.normal(kb, (dim,), dtype)
        else:
            g = jnp.ones((dim,), dtype)
            b = jnp.zeros((dim,), dtype)
        return g, b

    return {
        "norm_q": norm(keys[8], keys[9]),
        "norm_k": norm(keys[10], keys[11]),
        "norm_v": norm(keys[12], keys[13]),
        # `norm` / `proj` exist in __init__ but are unused in forward.
        "norm": norm(keys[14], keys[15]),
        "to_q": linear(keys[0], keys[1]),
        "to_k": linear(keys[2], keys[3]),
        "to_v": linear(keys[4], keys[5]),
        "proj": linear(keys[6], keys[7]),
    }


def prepare_normqkv_params(params, weight_dtype=jnp.bfloat16):
    """One-time weight prep (hoisted out of the per-call forward).

    Folds LN affine into the projections (in f32), fuses k/v into a single
    (D, 2D) projection, pads output widths to a multiple of 128 (lane-dense
    stores) and casts the effective weights to bf16 for full-rate MXU.
    """
    gq, bq = params["norm_q"]
    gk, bk = params["norm_k"]
    gv, bv = params["norm_v"]
    wq, biasq = params["to_q"]
    wk, biask = params["to_k"]
    wv, biasv = params["to_v"]

    def fold(gamma, beta, w_t, bias):
        w32 = w_t.astype(jnp.float32)
        w_eff = gamma.astype(jnp.float32)[:, None] * w32
        b_eff = beta.astype(jnp.float32) @ w32 + bias.astype(jnp.float32)
        return w_eff, b_eff

    wq_eff, bq_eff = fold(gq, bq, wq, biasq)
    wk_eff, bk_eff = fold(gk, bk, wk, biask)
    wv_eff, bv_eff = fold(gv, bv, wv, biasv)

    # k and v share kv and its LN statistics -> single fused projection.
    wkv_eff = jnp.concatenate([wk_eff, wv_eff], axis=1)
    bkv_eff = jnp.concatenate([bk_eff, bv_eff], axis=0)

    def pad_lane(w, b):
        n = w.shape[1]
        n_pad = _round_up(n, 128)
        if n_pad != n:
            w = jnp.pad(w, ((0, 0), (0, n_pad - n)))
            b = jnp.pad(b, (0, n_pad - n))
        return (w.astype(weight_dtype),
                b.astype(jnp.float32).reshape(1, n_pad))

    wq_p, bq_p = pad_lane(wq_eff, bq_eff)
    wkv_p, bkv_p = pad_lane(wkv_eff, bkv_eff)
    return {"wq": wq_p, "bq": bq_p, "wkv": wkv_p, "bkv": bkv_p}


# ---------------------------------------------------------------------------
# Forward
# ---------------------------------------------------------------------------
@jax.jit
def normqkv_forward(q, kv, prepared):
    """q, kv: (B, S, D). Returns (q_out, k_out, v_out), each (B, S, D)."""
    B, S, D = q.shape
    q2 = q.reshape(B * S, D)
    kv2 = kv.reshape(B * S, D)

    q_out = fused_ln_matmul(q2, prepared["wq"], prepared["bq"], n_out=D)
    kv_out = fused_ln_matmul(kv2, prepared["wkv"], prepared["bkv"], n_out=2 * D)
    k_out = kv_out[:, :D]
    v_out = kv_out[:, D:2 * D]

    return (q_out.reshape(B, S, D).astype(q.dtype),
            k_out.reshape(B, S, D).astype(kv.dtype),
            v_out.reshape(B, S, D).astype(kv.dtype))


def _reference_forward(q, kv, params):
    """Pure-JAX (f32) reference matching the PyTorch forward."""
    def ln(x, g, b):
        m = jnp.mean(x, axis=-1, keepdims=True)
        v = jnp.mean((x - m) ** 2, axis=-1, keepdims=True)
        return (x - m) / jnp.sqrt(v + LN_EPS) * g + b

    gq, bq = params["norm_q"]
    gk, bk = params["norm_k"]
    gv, bv = params["norm_v"]
    wq, biasq = params["to_q"]
    wk, biask = params["to_k"]
    wv, biasv = params["to_v"]
    qn = ln(q, gq, bq)
    kn = ln(kv, gk, bk)
    vn = ln(kv, gv, bv)
    return (qn @ wq + biasq, kn @ wk + biask, vn @ wv + biasv)


if __name__ == "__main__":
    B, S, D = 2, 8, 32
    key = jax.random.PRNGKey(0)
    kq, kkv, kp = jax.random.split(key, 3)
    q = jax.random.normal(kq, (B, S, D), jnp.float32)
    kv = jax.random.normal(kkv, (B, S, D), jnp.float32)
    params = init_normqkv_params(kp, D)
    prepared = prepare_normqkv_params(params)   # one-time weight prep

    q_out, k_out, v_out = normqkv_forward(q, kv, prepared)
    jax.block_until_ready((q_out, k_out, v_out))

    q_ref, k_ref, v_ref = _reference_forward(q, kv, params)
    # bf16 effective weights with f32 accumulation -> loosened tolerances.
    assert jnp.allclose(q_out, q_ref, atol=3e-2, rtol=3e-2)
    assert jnp.allclose(k_out, k_ref, atol=3e-2, rtol=3e-2)
    assert jnp.allclose(v_out, v_ref, atol=3e-2, rtol=3e-2)

    print("KERNEL_OK")
</pallas_src>

<mosaic_0001>
module attributes {stable_mosaic.version = 11 : i64} {
  func.func @_ln_matmul_kernel(%arg0: i32, %arg1: memref<16x32xf32, #tpu.memory_space<vmem>>, %arg2: memref<32x128xbf16, #tpu.memory_space<vmem>>, %arg3: memref<1x128xf32, #tpu.memory_space<vmem>>, %arg4: memref<16x128xf32, #tpu.memory_space<vmem>>) attributes {dimension_semantics = [#tpu.dimension_semantics<parallel>], iteration_bounds = array<i64: 1>, scalar_prefetch = 0 : i64, scratch_operands = 0 : i64, tpu.core_type = #tpu.core_type<tc>, window_params = [{transform_indices = @transform_0, window_bounds = array<i64: 16, 32>}, {pipeline_mode = #tpu.pipeline_mode<synchronous>, transform_indices = @transform_1, window_bounds = array<i64: 32, 128>}, {pipeline_mode = #tpu.pipeline_mode<synchronous>, transform_indices = @transform_2, window_bounds = array<i64: 1, 128>}, {transform_indices = @transform_3, window_bounds = array<i64: 16, 128>}]} {
    %c0 = arith.constant 0 : index
    %c0_0 = arith.constant 0 : index
    %0 = vector.load %arg1[%c0, %c0_0] : memref<16x32xf32, #tpu.memory_space<vmem>>, vector<16x32xf32>
    %cst = arith.constant dense<0.000000e+00> : vector<16xf32>
    %1 = vector.multi_reduction <add>, %0, %cst [1] : vector<16x32xf32> to vector<16xf32>
    %2 = vector.shape_cast %1 : vector<16xf32> to vector<16x1xf32>
    %cst_1 = arith.constant 3.200000e+01 : f32
    %3 = vector.broadcast %cst_1 : f32 to vector<16x1xf32>
    %4 = arith.divf %2, %3 : vector<16x1xf32>
    %5 = vector.broadcast %4 : vector<16x1xf32> to vector<16x32xf32>
    %6 = arith.subf %0, %5 : vector<16x32xf32>
    %7 = arith.mulf %6, %6 : vector<16x32xf32>
    %cst_2 = arith.constant dense<0.000000e+00> : vector<16xf32>
    %8 = vector.multi_reduction <add>, %7, %cst_2 [1] : vector<16x32xf32> to vector<16xf32>
    %9 = vector.shape_cast %8 : vector<16xf32> to vector<16x1xf32>
    %cst_3 = arith.constant 3.200000e+01 : f32
    %10 = vector.broadcast %cst_3 : f32 to vector<16x1xf32>
    %11 = arith.divf %9, %10 : vector<16x1xf32>
    %cst_4 = arith.constant 9.99999974E-6 : f32
    %12 = vector.broadcast %cst_4 : f32 to vector<16x1xf32>
    %13 = arith.addf %11, %12 : vector<16x1xf32>
    %14 = math.rsqrt %13 : vector<16x1xf32>
    %15 = vector.broadcast %14 : vector<16x1xf32> to vector<16x32xf32>
    %16 = arith.mulf %6, %15 : vector<16x32xf32>
    %17 = arith.truncf %16 : vector<16x32xf32> to vector<16x32xbf16>
    %c0_5 = arith.constant 0 : index
    %c0_6 = arith.constant 0 : index
    %18 = vector.load %arg2[%c0_5, %c0_6] : memref<32x128xbf16, #tpu.memory_space<vmem>>, vector<32x128xbf16>
    %cst_7 = arith.constant dense<0.000000e+00> : vector<16x128xf32>
    %19 = tpu.matmul %17, %18, %cst_7 {dimension_numbers = #tpu.dot_dimension_numbers<[1], [0], [0], [1], [0, 0, 1, 1], [], []>} : vector<16x32xbf16>, vector<32x128xbf16>, vector<16x128xf32> -> vector<16x128xf32>
    %c0_8 = arith.constant 0 : index
    %c0_9 = arith.constant 0 : index
    %20 = vector.load %arg3[%c0_8, %c0_9] : memref<1x128xf32, #tpu.memory_space<vmem>>, vector<1x128xf32>
    %21 = vector.broadcast %20 : vector<1x128xf32> to vector<16x128xf32>
    %22 = arith.addf %19, %21 : vector<16x128xf32>
    %c0_10 = arith.constant 0 : index
    %c0_11 = arith.constant 0 : index
    %23 = vector.load %arg4[%c0_10, %c0_11] : memref<16x128xf32, #tpu.memory_space<vmem>>, vector<16x128xf32>
    tpu.vector_store %arg4[%c0_10, %c0_11], %22 {strides = array<i32>} : memref<16x128xf32, #tpu.memory_space<vmem>>, vector<16x128xf32>,
    return
  }
  func.func @transform_0(%arg0: i32) -> (i32, i32) {
    %c0_i32 = arith.constant 0 : i32
    %c0_i32_0 = arith.constant 0 : i32
    return %arg0, %c0_i32 : i32, i32
  }
  func.func @transform_1(%arg0: i32) -> (i32, i32) {
    %c0_i32 = arith.constant 0 : i32
    %c0_i32_0 = arith.constant 0 : i32
    %c0_i32_1 = arith.constant 0 : i32
    return %c0_i32, %c0_i32_0 : i32, i32
  }
  func.func @transform_2(%arg0: i32) -> (i32, i32) {
    %c0_i32 = arith.constant 0 : i32
    %c0_i32_0 = arith.constant 0 : i32
    %c0_i32_1 = arith.constant 0 : i32
    return %c0_i32, %c0_i32_0 : i32, i32
  }
  func.func @transform_3(%arg0: i32) -> (i32, i32) {
    %c0_i32 = arith.constant 0 : i32
    %c0_i32_0 = arith.constant 0 : i32
    return %arg0, %c0_i32 : i32, i32
  }
}

module attributes {stable_mosaic.version = 11 : i64} {
  func.func @_ln_matmul_kernel(%arg0: i32, %arg1: memref<16x32xf32, #tpu.memory_space<vmem>>, %arg2: memref<32x128xbf16, #tpu.memory_space<vmem>>, %arg3: memref<1x128xf32, #tpu.memory_space<vmem>>, %arg4: memref<16x128xf32, #tpu.memory_space<vmem>>) attributes {dimension_semantics = [#tpu.dimension_semantics<parallel>], iteration_bounds = array<i64: 1>, scalar_prefetch = 0 : i64, scratch_operands = 0 : i64, tpu.core_type = #tpu.core_type<tc>, window_params = [{transform_indices = @transform_0, window_bounds = array<i64: 16, 32>}, {pipeline_mode = #tpu.pipeline_mode<synchronous>, transform_indices = @transform_1, window_bounds = array<i64: 32, 128>}, {pipeline_mode = #tpu.pipeline_mode<synchronous>, transform_indices = @transform_2, window_bounds = array<i64: 1, 128>}, {transform_indices = @transform_3, window_bounds = array<i64: 16, 128>}]} {
    %c0 = arith.constant 0 : index
    %c0_0 = arith.constant 0 : index
    %0 = vector.load %arg1[%c0, %c0_0] : memref<16x32xf32, #tpu.memory_space<vmem>>, vector<16x32xf32>
    %cst = arith.constant dense<0.000000e+00> : vector<16xf32>
    %1 = vector.multi_reduction <add>, %0, %cst [1] : vector<16x32xf32> to vector<16xf32>
    %2 = vector.shape_cast %1 : vector<16xf32> to vector<16x1xf32>
    %cst_1 = arith.constant 3.200000e+01 : f32
    %3 = vector.broadcast %cst_1 : f32 to vector<16x1xf32>
    %4 = arith.divf %2, %3 : vector<16x1xf32>
    %5 = vector.broadcast %4 : vector<16x1xf32> to vector<16x32xf32>
    %6 = arith.subf %0, %5 : vector<16x32xf32>
    %7 = arith.mulf %6, %6 : vector<16x32xf32>
    %cst_2 = arith.constant dense<0.000000e+00> : vector<16xf32>
    %8 = vector.multi_reduction <add>, %7, %cst_2 [1] : vector<16x32xf32> to vector<16xf32>
    %9 = vector.shape_cast %8 : vector<16xf32> to vector<16x1xf32>
    %cst_3 = arith.constant 3.200000e+01 : f32
    %10 = vector.broadcast %cst_3 : f32 to vector<16x1xf32>
    %11 = arith.divf %9, %10 : vector<16x1xf32>
    %cst_4 = arith.constant 9.99999974E-6 : f32
    %12 = vector.broadcast %cst_4 : f32 to vector<16x1xf32>
    %13 = arith.addf %11, %12 : vector<16x1xf32>
    %14 = math.rsqrt %13 : vector<16x1xf32>
    %15 = vector.broadcast %14 : vector<16x1xf32> to vector<16x32xf32>
    %16 = arith.mulf %6, %15 : vector<16x32xf32>
    %17 = arith.truncf %16 : vector<16x32xf32> to vector<16x32xbf16>
    %c0_5 = arith.constant 0 : index
    %c0_6 = arith.constant 0 : index
    %18 = vector.load %arg2[%c0_5, %c0_6] : memref<32x128xbf16, #tpu.memory_space<vmem>>, vector<32x128xbf16>
    %cst_7 = arith.constant dense<0.000000e+00> : vector<16x128xf32>
    %19 = tpu.matmul %17, %18, %cst_7 {dimension_numbers = #tpu.dot_dimension_numbers<[1], [0], [0], [1], [0, 0, 1, 1], [], []>} : vector<16x32xbf16>, vector<32x128xbf16>, vector<16x128xf32> -> vector<16x128xf32>
    %c0_8 = arith.constant 0 : index
    %c0_9 = arith.constant 0 : index
    %20 = vector.load %arg3[%c0_8, %c0_9] : memref<1x128xf32, #tpu.memory_space<vmem>>, vector<1x128xf32>
    %21 = vector.broadcast %20 : vector<1x128xf32> to vector<16x128xf32>
    %22 = arith.addf %19, %21 : vector<16x128xf32>
    %c0_10 = arith.constant 0 : index
    %c0_11 = arith.constant 0 : index
    %23 = vector.load %arg4[%c0_10, %c0_11] : memref<16x128xf32, #tpu.memory_space<vmem>>, vector<16x128xf32>
    tpu.vector_store %arg4[%c0_10, %c0_11], %22 {strides = array<i32>} : memref<16x128xf32, #tpu.memory_space<vmem>>, vector<16x128xf32>,
    return
  }
  func.func @transform_0(%arg0: i32) -> (i32, i32) {
    %c0_i32 = arith.constant 0 : i32
    %c0_i32_0 = arith.constant 0 : i32
    return %arg0, %c0_i32 : i32, i32
  }
  func.func @transform_1(%arg0: i32) -> (i32, i32) {
    %c0_i32 = arith.constant 0 : i32
    %c0_i32_0 = arith.constant 0 : i32
    %c0_i32_1 = arith.constant 0 : i32
    return %c0_i32, %c0_i32_0 : i32, i32
  }
  func.func @transform_2(%arg0: i32) -> (i32, i32) {
    %c0_i32 = arith.constant 0 : i32
    %c0_i32_0 = arith.constant 0 : i32
    %c0_i32_1 = arith.constant 0 : i32
    return %c0_i32, %c0_i32_0 : i32, i32
  }
  func.func @transform_3(%arg0: i32) -> (i32, i32) {
    %c0_i32 = arith.constant 0 : i32
    %c0_i32_0 = arith.constant 0 : i32
    return %arg0, %c0_i32 : i32, i32
  }
}

</mosaic_0001>

<llo_original>
// kernel: normqkv_forward.3
$region0: #{normqkv_forward.3}
  #allocation0 [shape = 'u32[]', space=smem, size = 0x4, offset = 0x4, fixed_abs, tag = 'smem constant byte address 0x4 - core index']
  #allocation1 [shape = 'u32[144,128]{1,0:T(1,128)}', space=vmem, size = 0x12000, scoped, tag = 'internal scratch']
  %s0 = inlined_call_operand.vmem [shape: f32[16,32], index: 0, kind: input, shape index: {}]
  %s1 = inlined_call_operand.vmem [shape: bf16[32,128], index: 1, kind: input, shape index: {}]
  %s2 = inlined_call_operand.vmem [shape: f32[1,128], index: 2, kind: input, shape index: {}]
  %s3 = inlined_call_operand.vmem [shape: f32[16,128], index: 3, kind: output, shape index: {}]
  %s4 = sld [smem:[#allocation0]]
  $region22: #{normqkv_forward.3} parent=0
    _
  %s6 = ssub.s32 1, %s4
  %s7 = scalar_select 0, %s6, %s4
  // Predicated region
  $region2: #{normqkv_forward.3} parent=0 // pred_check
    _
  $region3: #{normqkv_forward.3} parent=0 // pred_check_branch
    %9 = sbr.rel (0) target = $region5
  $region4: #{normqkv_forward.3} parent=0 // pred_region
    _
  $region5: #{normqkv_forward.3} parent=0 // pred_fallthru
    _
  // Predicated region
  $region6: #{normqkv_forward.3} parent=0 // pred_check
    _
  $region7: #{normqkv_forward.3} parent=0 // pred_check_branch
    %11 = sbr.rel (0) target = $region9
  $region8: #{normqkv_forward.3} parent=0 // pred_region
    _
  $region9: #{normqkv_forward.3} parent=0 // pred_fallthru
    _
  // Predicated region
  $region10: #{normqkv_forward.3} parent=0 // pred_check
    _
  $region11: #{normqkv_forward.3} parent=0 // pred_check_branch
    %13 = sbr.rel (0) target = $region13
  $region12: #{normqkv_forward.3} parent=0 // pred_region
    _
  $region13: #{normqkv_forward.3} parent=0 // pred_fallthru
    _
  %v15 = vld [vmem:[%s0] sm:$0xff]
  %v16 = vld [vmem:[%s0 + $0x8] sm:$0xff]
  %vm17 = vcmask 261120
  %v18 = vsel %vm17, %v15, 0.0
  %19 = vadd.xlane.f32.xlu0 %v18
  %v20 = vpop.xlane.xlu0 %19
  %v21 = vsel %vm17, %v16, 0.0
  %22 = vadd.xlane.f32.xlu0 %v21
  %v23 = vpop.xlane.xlu0 %22
  %v24 = vrcp.pop 32.0
  %v25 = vmul.f32 %v20, %v24
  %v26 = vmul.f32 %v23, %v24
  %v27 = vsub.f32 %v15, %v25
  %v28 = vsub.f32 %v16, %v26
  %v29 = vmul.f32 %v27, %v27
  %v30 = vmul.f32 %v28, %v28
  %v31 = vsel %vm17, %v29, 0.0
  %32 = vadd.xlane.f32.xlu0 %v31
  %v33 = vpop.xlane.xlu0 %32
  %v34 = vsel %vm17, %v30, 0.0
  %35 = vadd.xlane.f32.xlu0 %v34
  %v36 = vpop.xlane.xlu0 %35
  %v37 = vmul.f32 %v33, %v24
  %v38 = vmul.f32 %v36, %v24
  %v39 = vadd.f32 %v37, 1e-05
  %v40 = vadd.f32 %v38, 1e-05
  %v41 = vrsqrt.pop %v39
  %v42 = vrsqrt.pop %v40
  %v43 = vmul.f32 %v27, %v41
  %v44 = vmul.f32 %v28, %v42
  %v45 = vpack.c.bf16 %v44, %v43
  %v46 = vld [vmem:[%s1] sm:$0xf]
  %v47 = vld [vmem:[%s1 + $0x4] sm:$0xf]
  %v48 = vld [vmem:[%s1 + $0x8] sm:$0xf]
  %v49 = vld [vmem:[%s1 + $0xc] sm:$0xf]
  %v50 = vld [vmem:[%s2] sm:$0x1]
  %v52 = vlaneseq
  %v53 = vshrl.u32 %v52, 7
  %v54 = vsub.s32 0, %v53
  %v55 = vrot.slane %v50, %v54
  %v61 = vunpack.c.l.b16 %v46
  %v62 = vunpack.c.l.b16 %v47
  %v63 = vunpack.c.l.b16 %v48
  %v64 = vunpack.c.l.b16 %v49
  %v65 = vpack.c.b16 %v62, %v61
  %v66 = vpack.c.b16 %v64, %v63
  %v70 = vsel %vm17, %v45, 0
  %72 = vmatprep.subr.bf16.mxu0 0
  %73 = vmatpush1.bf16.msra.mxu0 %v65
  %74 = vmatprep.subr.bf16.mxu0 0
  %75 = vmatpush1.bf16.msra.mxu0 %v66
  %76 = vmatprep.subr.bf16.mxu0 0
  %77 = vmatpush1.bf16.msra.mxu0 0
  %78 = vmatprep.subr.bf16.mxu0 0
  %79 = vmatpush1.bf16.msra.mxu0 0
  %80 = vmatprep.subr.bf16.mxu0 0
  %81 = vmatpush1.bf16.msra.mxu0 0
  %82 = vmatprep.subr.bf16.mxu0 0
  %83 = vmatpush1.bf16.msra.mxu0 0
  %84 = vmatprep.subr.bf16.mxu0 0
  %85 = vmatpush1.bf16.msra.mxu0 0
  %86 = vmatprep.subr.bf16.mxu0 0
  %87 = vmatpush1.bf16.msra.mxu0 0
  %88 = vmatprep.subr.bf16.mxu0 0
  %89 = vmatpush1.bf16.msra.mxu0 0
  %90 = vmatprep.subr.bf16.mxu0 0
  %91 = vmatpush1.bf16.msra.mxu0 0
  %92 = vmatprep.subr.bf16.mxu0 0
  %93 = vmatpush1.bf16.msra.mxu0 0
  %94 = vmatprep.subr.bf16.mxu0 0
  %95 = vmatpush1.bf16.msra.mxu0 0
  %96 = vmatprep.subr.bf16.mxu0 0
  %97 = vmatpush1.bf16.msra.mxu0 0
  %98 = vmatprep.subr.bf16.mxu0 0
  %99 = vmatpush1.bf16.msra.mxu0 0
  %100 = vmatprep.subr.bf16.mxu0 0
  %101 = vmatpush1.bf16.msra.mxu0 0
  %102 = vmatprep.subr.bf16.mxu0 0
  %103 = vmatpush1.bf16.msra.mxu0 0
  %104 = vmatprep.mubr.bf16.mxu0 0
  %105 = vmatmul.mubr.bf16.gmra.mrb[0].mxu0 %v70
  %v106 = vpop.f32.mrb[0].mxu0
  %v107 = vadd.f32 %v55, %v106
  %v108 = vpop.f32.mrb[0].mxu0
  %v109 = vpop.f32.mrb[0].mxu0
  %v110 = vadd.f32 %v55, %v109
  %v111 = vpop.f32.mrb[0].mxu0
  %112 = vdwg.mxu0
  %113 = vst [vmem:[%s3] sm:$0xff] %v107
  %114 = vst [vmem:[%s3 + $0x8] sm:$0xff] %v110
  // Predicated region
  $region14: #{normqkv_forward.3} parent=0 // pred_check
    _
  $region15: #{normqkv_forward.3} parent=0 // pred_check_branch
    %116 = sbr.rel (0) target = $region17
  $region16: #{normqkv_forward.3} parent=0 // pred_region
    _
  $region17: #{normqkv_forward.3} parent=0 // pred_fallthru
    _
  // Predicated region
  $region18: #{normqkv_forward.3} parent=0 // pred_check
    _
  $region19: #{normqkv_forward.3} parent=0 // pred_check_branch
    %118 = sbr.rel (0) target = $region21
  $region20: #{normqkv_forward.3} parent=0 // pred_region
    _
  $region21: #{normqkv_forward.3} parent=0 // pred_fallthru
    _

// kernel: normqkv_forward.2
$region0: #{normqkv_forward.2}
  #allocation0 [shape = 'u32[]', space=smem, size = 0x4, offset = 0x4, fixed_abs, tag = 'smem constant byte address 0x4 - core index']
  #allocation1 [shape = 'u32[144,128]{1,0:T(1,128)}', space=vmem, size = 0x12000, scoped, tag = 'internal scratch']
  %s0 = inlined_call_operand.hbm [shape: f32[16,32], index: 0, kind: input, shape index: {}]
  %s1 = inlined_call_operand.vmem [shape: bf16[32,128], index: 1, kind: input, shape index: {}]
  %s2 = inlined_call_operand.vmem [shape: f32[1,128], index: 2, kind: input, shape index: {}]
  %s3 = inlined_call_operand.vmem [shape: f32[16,128], index: 3, kind: output, shape index: {}]
  %s4 = sld [smem:[#allocation0]]
  $region26: #{normqkv_forward.2} parent=0
    _
  %s6 = ssub.s32 1, %s4
  %s7 = scalar_select 0, %s6, %s4
  $region1: #{normqkv_forward.2} parent=0
    #allocation2 [shape = 'u8[8192]{0}', space=vmem, size = 0x2000, scoped, tag = 'input window, operand 0, single buffered']
    #allocation3 [shape = 's32[1]{0}', space=sflag, size = 0x4, scoped, tag = 'scoped memory for normqkv_forward.2']
    %8 = vsyncpa [#allocation3], 0
    // Predicated region
    $region2: #{normqkv_forward.2} parent=1 // pred_check
      _
    $region3: #{normqkv_forward.2} parent=1 // pred_check_branch
      %10 = sbr.rel (0) target = $region5
    $region4: #{normqkv_forward.2} parent=1 // pred_region
      %s12 = ssub.s32 256, 256
      %13 = vsyncadd [#allocation3], %s12
      %s14 = sshll.u32 [#allocation2], 4
      %s15 = int_to_ptr.vmem [resolvable:$true] %s14
      %20 = dma.hbm_to_vmem [thread:$0]  %s0, 256, %s15, [#allocation3], 128, 128, 8
    $region5: #{normqkv_forward.2} parent=1 // pred_fallthru
      _
    // Predicated region
    $region6: #{normqkv_forward.2} parent=1 // pred_check
      _
    $region7: #{normqkv_forward.2} parent=1 // pred_check_branch
      %22 = sbr.rel (0) target = $region9
    $region8: #{normqkv_forward.2} parent=1 // pred_region
      _
    $region9: #{normqkv_forward.2} parent=1 // pred_fallthru
      _
    // Predicated region
    $region10: #{normqkv_forward.2} parent=1 // pred_check
      _
    $region11: #{normqkv_forward.2} parent=1 // pred_check_branch
      %24 = sbr.rel (0) target = $region13
    $region12: #{normqkv_forward.2} parent=1 // pred_region
      _
    $region13: #{normqkv_forward.2} parent=1 // pred_fallthru
      _
    // Predicated region
    $region14: #{normqkv_forward.2} parent=1 // pred_check
      _
    $region15: #{normqkv_forward.2} parent=1 // pred_check_branch
      %26 = sbr.rel (0) target = $region17
    $region16: #{normqkv_forward.2} parent=1 // pred_region
      %27 = dma.done [#allocation3], 256
    $region17: #{normqkv_forward.2} parent=1 // pred_fallthru
      _
    %v29 = vld [vmem:[#allocation2] sm:$0xff]
    %v30 = vld [vmem:[#allocation2 + $0x8] sm:$0xff]
    %vm31 = vcmask 261120
    %v32 = vsel %vm31, %v29, 0.0
    %33 = vadd.xlane.f32.xlu0 %v32
    %v34 = vpop.xlane.xlu0 %33
    %v35 = vsel %vm31, %v30, 0.0
    %36 = vadd.xlane.f32.xlu0 %v35
    %v37 = vpop.xlane.xlu0 %36
    %v38 = vrcp.pop 32.0
    %v39 = vmul.f32 %v34, %v38
    %v40 = vmul.f32 %v37, %v38
    %v41 = vsub.f32 %v29, %v39
    %v42 = vsub.f32 %v30, %v40
    %v43 = vmul.f32 %v41, %v41
    %v44 = vmul.f32 %v42, %v42
    %v45 = vsel %vm31, %v43, 0.0
    %46 = vadd.xlane.f32.xlu0 %v45
    %v47 = vpop.xlane.xlu0 %46
    %v48 = vsel %vm31, %v44, 0.0
    %49 = vadd.xlane.f32.xlu0 %v48
    %v50 = vpop.xlane.xlu0 %49
    %v51 = vmul.f32 %v47, %v38
    %v52 = vmul.f32 %v50, %v38
    %v53 = vadd.f32 %v51, 1e-05
    %v54 = vadd.f32 %v52, 1e-05
    %v55 = vrsqrt.pop %v53
    %v56 = vrsqrt.pop %v54
    %v57 = vmul.f32 %v41, %v55
    %v58 = vmul.f32 %v42, %v56
    %v59 = vpack.c.bf16 %v58, %v57
    %v60 = vld [vmem:[%s1] sm:$0xf]
    %v61 = vld [vmem:[%s1 + $0x4] sm:$0xf]
    %v62 = vld [vmem:[%s1 + $0x8] sm:$0xf]
    %v63 = vld [vmem:[%s1 + $0xc] sm:$0xf]
    %v64 = vld [vmem:[%s2] sm:$0x1]
    %v66 = vlaneseq
    %v67 = vshrl.u32 %v66, 7
    %v68 = vsub.s32 0, %v67
    %v69 = vrot.slane %v64, %v68
    %v75 = vunpack.c.l.b16 %v60
    %v76 = vunpack.c.l.b16 %v61
    %v77 = vunpack.c.l.b16 %v62
    %v78 = vunpack.c.l.b16 %v63
    %v79 = vpack.c.b16 %v76, %v75
    %v80 = vpack.c.b16 %v78, %v77
    %v84 = vsel %vm31, %v59, 0
    %86 = vmatprep.subr.bf16.mxu0 0
    %87 = vmatpush1.bf16.msra.mxu0 %v79
    %88 = vmatprep.subr.bf16.mxu0 0
    %89 = vmatpush1.bf16.msra.mxu0 %v80
    %90 = vmatprep.subr.bf16.mxu0 0
    %91 = vmatpush1.bf16.msra.mxu0 0
    %92 = vmatprep.subr.bf16.mxu0 0
    %93 = vmatpush1.bf16.msra.mxu0 0
    %94 = vmatprep.subr.bf16.mxu0 0
    %95 = vmatpush1.bf16.msra.mxu0 0
    %96 = vmatprep.subr.bf16.mxu0 0
    %97 = vmatpush1.bf16.msra.mxu0 0
    %98 = vmatprep.subr.bf16.mxu0 0
    %99 = vmatpush1.bf16.msra.mxu0 0
    %100 = vmatprep.subr.bf16.mxu0 0
    %101 = vmatpush1.bf16.msra.mxu0 0
    %102 = vmatprep.subr.bf16.mxu0 0
    %103 = vmatpush1.bf16.msra.mxu0 0
    %104 = vmatprep.subr.bf16.mxu0 0
    %105 = vmatpush1.bf16.msra.mxu0 0
    %106 = vmatprep.subr.bf16.mxu0 0
    %107 = vmatpush1.bf16.msra.mxu0 0
    %108 = vmatprep.subr.bf16.mxu0 0
    %109 = vmatpush1.bf16.msra.mxu0 0
    %110 = vmatprep.subr.bf16.mxu0 0
    %111 = vmatpush1.bf16.msra.mxu0 0
    %112 = vmatprep.subr.bf16.mxu0 0
    %113 = vmatpush1.bf16.msra.mxu0 0
    %114 = vmatprep.subr.bf16.mxu0 0
    %115 = vmatpush1.bf16.msra.mxu0 0
    %116 = vmatprep.subr.bf16.mxu0 0
    %117 = vmatpush1.bf16.msra.mxu0 0
    %118 = vmatprep.mubr.bf16.mxu0 0
    %119 = vmatmul.mubr.bf16.gmra.mrb[0].mxu0 %v84
    %v120 = vpop.f32.mrb[0].mxu0
    %v121 = vadd.f32 %v69, %v120
    %v122 = vpop.f32.mrb[0].mxu0
    %v123 = vpop.f32.mrb[0].mxu0
    %v124 = vadd.f32 %v69, %v123
    %v125 = vpop.f32.mrb[0].mxu0
    %126 = vdwg.mxu0
    %127 = vst [vmem:[%s3] sm:$0xff] %v121
    %128 = vst [vmem:[%s3 + $0x8] sm:$0xff] %v124
    // Predicated region
    $region18: #{normqkv_forward.2} parent=1 // pred_check
      _
    $region19: #{normqkv_forward.2} parent=1 // pred_check_branch
      %130 = sbr.rel (0) target = $region21
    $region20: #{normqkv_forward.2} parent=1 // pred_region
      _
    $region21: #{normqkv_forward.2} parent=1 // pred_fallthru
      _
    // Predicated region
    $region22: #{normqkv_forward.2} parent=1 // pred_check
      _
    $region23: #{normqkv_forward.2} parent=1 // pred_check_branch
      %132 = sbr.rel (0) target = $region25
    $region24: #{normqkv_forward.2} parent=1 // pred_region
      _
    $region25: #{normqkv_forward.2} parent=1 // pred_fallthru
      _
    %133 = vsyncpa [#allocation3], 1

</llo_original>
